<compile_context>
chip_gen: v7x
topology: tpu7x:2x2x1
jax: 0.10.0
libtpu: 0.0.40
codegen_flags: <defaults>
</compile_context>

<pallas_src>
import functools

import jax
import jax.numpy as jnp
from jax.experimental import pallas as pl
from jax.experimental.pallas import tpu as pltpu


# ---------------------------------------------------------------------------
# Kernels
# ---------------------------------------------------------------------------

def _dw_conv1d_tiled_kernel(halo_ref, x_ref, w_ref, b_ref, o_ref, *,
                            stride, pad, ksize, mult, out_tile):
    """One (batch, C-tile, L-tile) step.

    halo_ref: (8, tc)           last 8 input rows of the previous L block
                                (contents ignored / zeroed for the first tile)
    x_ref   : (BL_in, tc)       current input block, BL_in = stride * out_tile
    w_ref   : (K, mult, tc) f32 per-channel taps,  w[k, m, g] = weight[g*mult+m, 0, k]
    b_ref   : (mult, tc)    f32 per-channel bias
    o_ref   : (mult, out_tile, tc)
    """
    is_first = pl.program_id(2) == 0

    w = w_ref[...]                     # read weights/bias once per tile
    b = b_ref[...]

    # Hoist the K strided tap reads (shared by all `mult` output slices).
    taps = []
    for k in range(ksize):
        if k >= pad:
            xk = x_ref[pl.ds(k - pad, out_tile, stride=stride), :].astype(jnp.float32)
        else:
            # Only output row 0 of this tile reaches back before the block:
            # its tap-k value is the halo row (zero padding for the first tile).
            prev = halo_ref[8 - pad + k, :][None, :].astype(jnp.float32)
            first = jnp.where(is_first, jnp.zeros_like(prev), prev)
            rest = x_ref[pl.ds(k - pad + stride, out_tile - 1, stride=stride),
                         :].astype(jnp.float32)
            xk = jnp.concatenate([first, rest], axis=0)
        taps.append(xk)

    for m in range(mult):
        acc = taps[0] * w[0, m]
        for k in range(1, ksize):
            acc = acc + taps[k] * w[k, m]
        acc = acc + b[m]
        o_ref[m, :, :] = acc.astype(o_ref.dtype)


def _dw_conv1d_padded_kernel(x_ref, w_ref, b_ref, o_ref, xpad_ref, *,
                             seq_len, pad, stride, ksize, mult, out_len, chans):
    """Fallback: whole sequence per step, zero padding staged in VMEM.

    Used only when the halo tiling above does not apply cleanly
    (odd L with even stride, stride == 1, very short sequences, ...).
    """
    if pad > 0:
        zeros = jnp.zeros((pad, chans), dtype=x_ref.dtype)
        xpad_ref[pl.ds(0, pad), :] = zeros
        xpad_ref[pl.ds(pad + seq_len, pad), :] = zeros
        xpad_ref[pl.ds(pad, seq_len), :] = x_ref[...]
        src = xpad_ref
    else:
        src = x_ref                    # no padding needed; skip the staging copy

    w = w_ref[...]
    b = b_ref[...]
    taps = [src[pl.ds(k, out_len, stride=stride), :].astype(jnp.float32)
            for k in range(ksize)]

    for m in range(mult):
        acc = taps[0] * w[0, m]
        for k in range(1, ksize):
            acc = acc + taps[k] * w[k, m]
        acc = acc + b[m]
        o_ref[m, :, :] = acc.astype(o_ref.dtype)


# ---------------------------------------------------------------------------
# Wrapper
# ---------------------------------------------------------------------------

def _choose_channel_tile(c):
    """Lane-dense channel tile: 128*k chunks for wide models, else full C."""
    if c % 128 == 0 and c > 512:
        for tc in (512, 256, 128):
            if c % tc == 0:
                return tc
    return c


def _choose_out_tile(out_len):
    """Output-row tile (sublanes). ~512 rows hits ~85% of HBM roofline."""
    for t in (512, 256, 128, 64, 32, 16, 8):
        if out_len % t == 0:
            return t
    return out_len


def conv_head_pooling_forward(x, weight, bias, *, stride):
    """Matches nn.Conv1d(C_in, C_out, kernel_size=stride+1, stride=stride,
    padding=stride//2, groups=C_in).

    x: (N, C_in, L), weight: (C_out, 1, K), bias: (C_out,) -> (N, C_out, L_out)
    """
    n, c_in, seq_len = x.shape
    c_out, wc, ksize = weight.shape
    assert wc == 1 and ksize == stride + 1 and c_out % c_in == 0
    mult = c_out // c_in
    pad = stride // 2
    out_len = (seq_len + 2 * pad - ksize) // stride + 1

    # Working layout (N, L, C_in): channels on the 128-lane axis.
    # TODO(synk): keep activations NLC across the model to drop this pass.
    x_t = jnp.transpose(x, (0, 2, 1))

    # weight -> (K, mult, C_in), bias -> (mult, C_in); PyTorch grouped-conv
    # output channel o = g*mult + m uses input channel g and filter weight[o].
    w_r = jnp.transpose(weight[:, 0, :].reshape(c_in, mult, ksize),
                        (2, 1, 0)).astype(jnp.float32)
    b_r = jnp.transpose(bias.reshape(c_in, mult), (1, 0)).astype(jnp.float32)

    tc = _choose_channel_tile(c_in)
    to = _choose_out_tile(out_len)
    bl_in = stride * to
    num_c = c_in // tc

    tiled_ok = (pad >= 1 and out_len >= 8 and seq_len >= 8
                and stride * out_len <= seq_len
                and out_len % to == 0
                and (bl_in % 8 == 0 or stride * out_len == seq_len))

    cost = pl.CostEstimate(
        flops=2 * ksize * n * mult * out_len * c_in,
        transcendentals=0,
        bytes_accessed=(x.size + n * mult * out_len * c_in) * x.dtype.itemsize)

    if tiled_ok:
        num_l = out_len // to
        kernel = functools.partial(
            _dw_conv1d_tiled_kernel, stride=stride, pad=pad, ksize=ksize,
            mult=mult, out_tile=to)
        out_k = pl.pallas_call(
            kernel,
            out_shape=jax.ShapeDtypeStruct((n, mult, out_len, c_in), x.dtype),
            grid=(n, num_c, num_l),
            in_specs=[
                # 8-row tail of the previous L block (halo); masked at l == 0.
                pl.BlockSpec(
                    (None, 8, tc),
                    lambda b, c, l: (b, jnp.maximum(l * (bl_in // 8) - 1, 0), c)),
                pl.BlockSpec((None, bl_in, tc), lambda b, c, l: (b, l, c)),
                pl.BlockSpec((ksize, mult, tc), lambda b, c, l: (0, 0, c)),
                pl.BlockSpec((mult, tc), lambda b, c, l: (0, c)),
            ],
            out_specs=pl.BlockSpec((None, mult, to, tc),
                                   lambda b, c, l: (b, 0, l, c)),
            compiler_params=pltpu.CompilerParams(
                dimension_semantics=("parallel", "parallel", "parallel"),
                vmem_limit_bytes=32 * 1024 * 1024),   # safe on v5e/v6e/v7x
            cost_estimate=cost,
        )(x_t, x_t, w_r, b_r)
    else:
        # Fallback: whole-L blocks with an in-VMEM padded staging copy.
        # TODO(synk): on v5e/v6e (128 MiB VMEM) this limit could be raised for
        # very large whole-sample blocks; prefer shapes that take the tiled path.
        kernel = functools.partial(
            _dw_conv1d_padded_kernel, seq_len=seq_len, pad=pad, stride=stride,
            ksize=ksize, mult=mult, out_len=out_len, chans=tc)
        out_k = pl.pallas_call(
            kernel,
            out_shape=jax.ShapeDtypeStruct((n, mult, out_len, c_in), x.dtype),
            grid=(n, num_c),
            in_specs=[
                pl.BlockSpec((None, seq_len, tc), lambda b, c: (b, 0, c)),
                pl.BlockSpec((ksize, mult, tc), lambda b, c: (0, 0, c)),
                pl.BlockSpec((mult, tc), lambda b, c: (0, c)),
            ],
            out_specs=pl.BlockSpec((None, mult, out_len, tc),
                                   lambda b, c: (b, 0, 0, c)),
            scratch_shapes=[pltpu.VMEM((seq_len + 2 * pad, tc), x.dtype)],
            compiler_params=pltpu.CompilerParams(
                dimension_semantics=("parallel", "parallel"),
                vmem_limit_bytes=32 * 1024 * 1024),
            cost_estimate=cost,
        )(x_t, w_r, b_r)

    # (N, mult, L_out, C_in) -> (N, C_in, mult, L_out) -> (N, C_out, L_out):
    # the single mandatory NLC->NCL output pass; the grouped-channel
    # interleave (o = g*mult + m) is folded into it for free.
    return jnp.transpose(out_k, (0, 3, 1, 2)).reshape(n, c_out, out_len)


# ---------------------------------------------------------------------------
# Self-test
# ---------------------------------------------------------------------------

def _reference(x, weight, bias, stride):
    pad = stride // 2
    y = jax.lax.conv_general_dilated(
        x, weight, window_strides=(stride,), padding=[(pad, pad)],
        dimension_numbers=("NCH", "OIH", "NCH"),
        feature_group_count=x.shape[1])
    return y + bias[None, :, None]


if __name__ == "__main__":
    key = jax.random.PRNGKey(0)

    cases = [
        # (n, c_in, c_out, seq_len, stride)
        (2, 4, 4, 16, 2),   # base config (mult=1), tiled path, single L tile
        (2, 4, 8, 16, 2),   # mult=2 grouped path (channel interleave)
        (1, 4, 4, 48, 2),   # multi L-tile path (halo read from previous tile)
        (2, 8, 8, 33, 2),   # odd L -> staged fallback path
        (1, 4, 4, 32, 4),   # stride 4 (pad=2, K=5)
    ]

    for idx, (n, c_in, c_out, seq_len, stride) in enumerate(cases):
        kx, kw, kb = jax.random.split(jax.random.fold_in(key, idx), 3)
        ksize = stride + 1
        x = jax.random.normal(kx, (n, c_in, seq_len), dtype=jnp.float32)
        weight = 0.2 * jax.random.normal(kw, (c_out, 1, ksize), dtype=jnp.float32)
        bias = 0.1 * jax.random.normal(kb, (c_out,), dtype=jnp.float32)

        out = conv_head_pooling_forward(x, weight, bias, stride=stride)
        out = jax.block_until_ready(out)
        ref = _reference(x, weight, bias, stride)

        assert out.shape == ref.shape, (out.shape, ref.shape)
        assert out.dtype == x.dtype
        err = float(jnp.max(jnp.abs(out - ref)))
        assert err < 1e-4, ((n, c_in, c_out, seq_len, stride), err)

    print("KERNEL_OK")
</pallas_src>

<mosaic_0001>
module attributes {stable_mosaic.version = 11 : i64} {
  func.func @_dw_conv1d_tiled_kernel(%arg0: i32, %arg1: i32, %arg2: i32, %arg3: memref<1x8x4xf32, #tpu.memory_space<vmem>>, %arg4: memref<1x16x4xf32, #tpu.memory_space<vmem>>, %arg5: memref<3x1x4xf32, #tpu.memory_space<vmem>>, %arg6: memref<1x4xf32, #tpu.memory_space<vmem>>, %arg7: memref<1x1x8x4xf32, #tpu.memory_space<vmem>>) attributes {dimension_semantics = [#tpu.dimension_semantics<parallel>, #tpu.dimension_semantics<parallel>, #tpu.dimension_semantics<parallel>], iteration_bounds = array<i64: 2, 1, 1>, scalar_prefetch = 0 : i64, scratch_operands = 0 : i64, tpu.core_type = #tpu.core_type<tc>, window_params = [{transform_indices = @transform_0, window_bounds = array<i64: 1, 8, 4>}, {transform_indices = @transform_1, window_bounds = array<i64: 1, 16, 4>}, {transform_indices = @transform_2, window_bounds = array<i64: 3, 1, 4>}, {transform_indices = @transform_3, window_bounds = array<i64: 1, 4>}, {transform_indices = @transform_4, window_bounds = array<i64: 1, 1, 8, 4>}]} {
    %c0_i32 = arith.constant 0 : i32
    %0 = arith.cmpi eq, %arg2, %c0_i32 : i32
    %c0 = arith.constant 0 : index
    %c0_0 = arith.constant 0 : index
    %c0_1 = arith.constant 0 : index
    %1 = vector.load %arg5[%c0, %c0_0, %c0_1] : memref<3x1x4xf32, #tpu.memory_space<vmem>>, vector<3x1x4xf32>
    %c0_2 = arith.constant 0 : index
    %c0_3 = arith.constant 0 : index
    %2 = vector.load %arg6[%c0_2, %c0_3] : memref<1x4xf32, #tpu.memory_space<vmem>>, vector<1x4xf32>
    %c0_4 = arith.constant 0 : index
    %c7 = arith.constant 7 : index
    %c0_5 = arith.constant 0 : index
    %3 = vector.load %arg3[%c0_4, %c7, %c0_5] : memref<1x8x4xf32, #tpu.memory_space<vmem>>, vector<1x1x4xf32>
    %4 = vector.shape_cast %3 : vector<1x1x4xf32> to vector<4xf32>
    %5 = vector.shape_cast %4 : vector<4xf32> to vector<1x4xf32>
    %cst = arith.constant 0.000000e+00 : f32
    %6 = vector.broadcast %cst : f32 to vector<1x4xf32>
    %7 = arith.select %0, %6, %5 : vector<1x4xf32>
    %c0_6 = arith.constant 0 : index
    %c1 = arith.constant 1 : index
    %c0_7 = arith.constant 0 : index
    %8 = tpu.strided_load %arg4[%c0_6, %c1, %c0_7] {strides = array<i32: 1, 2, 1>} : memref<1x16x4xf32, #tpu.memory_space<vmem>>, vector<1x7x4xf32>
    %9 = vector.shape_cast %8 : vector<1x7x4xf32> to vector<7x4xf32>
    %10 = tpu.concatenate %7, %9 in 0 : vector<1x4xf32>, vector<7x4xf32> -> vector<8x4xf32>
    %c0_8 = arith.constant 0 : index
    %c0_9 = arith.constant 0 : index
    %c0_10 = arith.constant 0 : index
    %11 = tpu.strided_load %arg4[%c0_8, %c0_9, %c0_10] {strides = array<i32: 1, 2, 1>} : memref<1x16x4xf32, #tpu.memory_space<vmem>>, vector<1x8x4xf32>
    %12 = vector.shape_cast %11 : vector<1x8x4xf32> to vector<8x4xf32>
    %c0_11 = arith.constant 0 : index
    %c1_12 = arith.constant 1 : index
    %c0_13 = arith.constant 0 : index
    %13 = tpu.strided_load %arg4[%c0_11, %c1_12, %c0_13] {strides = array<i32: 1, 2, 1>} : memref<1x16x4xf32, #tpu.memory_space<vmem>>, vector<1x8x4xf32>
    %14 = vector.shape_cast %13 : vector<1x8x4xf32> to vector<8x4xf32>
    %15 = vector.extract_strided_slice %1 {offsets = [0, 0, 0], sizes = [1, 1, 4], strides = [1, 1, 1]} : vector<3x1x4xf32> to vector<1x1x4xf32>
    %16 = vector.shape_cast %15 : vector<1x1x4xf32> to vector<4xf32>
    %17 = vector.shape_cast %16 : vector<4xf32> to vector<1x4xf32>
    %18 = vector.broadcast %17 : vector<1x4xf32> to vector<8x4xf32>
    %19 = arith.mulf %10, %18 : vector<8x4xf32>
    %20 = vector.extract_strided_slice %1 {offsets = [1, 0, 0], sizes = [1, 1, 4], strides = [1, 1, 1]} : vector<3x1x4xf32> to vector<1x1x4xf32>
    %21 = vector.shape_cast %20 : vector<1x1x4xf32> to vector<4xf32>
    %22 = vector.shape_cast %21 : vector<4xf32> to vector<1x4xf32>
    %23 = vector.broadcast %22 : vector<1x4xf32> to vector<8x4xf32>
    %24 = arith.mulf %12, %23 : vector<8x4xf32>
    %25 = arith.addf %19, %24 : vector<8x4xf32>
    %26 = vector.extract_strided_slice %1 {offsets = [2, 0, 0], sizes = [1, 1, 4], strides = [1, 1, 1]} : vector<3x1x4xf32> to vector<1x1x4xf32>
    %27 = vector.shape_cast %26 : vector<1x1x4xf32> to vector<4xf32>
    %28 = vector.shape_cast %27 : vector<4xf32> to vector<1x4xf32>
    %29 = vector.broadcast %28 : vector<1x4xf32> to vector<8x4xf32>
    %30 = arith.mulf %14, %29 : vector<8x4xf32>
    %31 = arith.addf %25, %30 : vector<8x4xf32>
    %32 = vector.shape_cast %2 : vector<1x4xf32> to vector<4xf32>
    %33 = vector.shape_cast %32 : vector<4xf32> to vector<1x4xf32>
    %34 = vector.broadcast %33 : vector<1x4xf32> to vector<8x4xf32>
    %35 = arith.addf %31, %34 : vector<8x4xf32>
    %c0_14 = arith.constant 0 : index
    %c0_15 = arith.constant 0 : index
    %c0_16 = arith.constant 0 : index
    %c0_17 = arith.constant 0 : index
    %36 = vector.load %arg7[%c0_14, %c0_15, %c0_16, %c0_17] : memref<1x1x8x4xf32, #tpu.memory_space<vmem>>, vector<1x1x8x4xf32>
    %37 = vector.shape_cast %36 : vector<1x1x8x4xf32> to vector<8x4xf32>
    %38 = vector.shape_cast %35 : vector<8x4xf32> to vector<1x1x8x4xf32>
    tpu.vector_store %arg7[%c0_14, %c0_15, %c0_16, %c0_17], %38 {strides = array<i32>} : memref<1x1x8x4xf32, #tpu.memory_space<vmem>>, vector<1x1x8x4xf32>,
    return
  }
  func.func @transform_0(%arg0: i32, %arg1: i32, %arg2: i32) -> (i32, i32, i32) {
    %c2_i32 = arith.constant 2 : i32
    %0 = arith.muli %arg2, %c2_i32 : i32
    %c1_i32 = arith.constant 1 : i32
    %1 = arith.subi %0, %c1_i32 : i32
    %c0_i32 = arith.constant 0 : i32
    %2 = arith.maxsi %1, %c0_i32 : i32
    %c0_i32_0 = arith.constant 0 : i32
    return %arg0, %2, %arg1 : i32, i32, i32
  }
  func.func @transform_1(%arg0: i32, %arg1: i32, %arg2: i32) -> (i32, i32, i32) {
    %c0_i32 = arith.constant 0 : i32
    return %arg0, %arg2, %arg1 : i32, i32, i32
  }
  func.func @transform_2(%arg0: i32, %arg1: i32, %arg2: i32) -> (i32, i32, i32) {
    %c0_i32 = arith.constant 0 : i32
    %c0_i32_0 = arith.constant 0 : i32
    %c0_i32_1 = arith.constant 0 : i32
    return %c0_i32, %c0_i32_0, %arg1 : i32, i32, i32
  }
  func.func @transform_3(%arg0: i32, %arg1: i32, %arg2: i32) -> (i32, i32) {
    %c0_i32 = arith.constant 0 : i32
    %c0_i32_0 = arith.constant 0 : i32
    return %c0_i32, %arg1 : i32, i32
  }
  func.func @transform_4(%arg0: i32, %arg1: i32, %arg2: i32) -> (i32, i32, i32, i32) {
    %c0_i32 = arith.constant 0 : i32
    %c0_i32_0 = arith.constant 0 : i32
    return %arg0, %c0_i32, %arg2, %arg1 : i32, i32, i32, i32
  }
}

</mosaic_0001>

<llo_original>
// kernel: tpu_custom_call.1
$region0: #{tpu_custom_call.1}
  #allocation0 [shape = 'u32[]', space=smem, size = 0x4, offset = 0x4, fixed_abs, tag = 'smem constant byte address 0x4 - core index']
  #allocation1 [shape = 'u32[144,128]{1,0:T(1,128)}', space=vmem, size = 0x12000, scoped, tag = 'internal scratch']
  %s0 = inlined_call_operand.vmem [shape: f32[2,16,4], index: 0, kind: input, shape index: {}]
  %s1 = inlined_call_operand.vmem [shape: f32[2,16,4], index: 1, kind: input, shape index: {}]
  %s2 = inlined_call_operand.vmem [shape: f32[3,1,4], index: 2, kind: input, shape index: {}]
  %s3 = inlined_call_operand.vmem [shape: f32[1,4], index: 3, kind: input, shape index: {}]
  %s4 = inlined_call_operand.vmem [shape: f32[2,1,8,4], index: 4, kind: output, shape index: {}]
  %s5 = sld [smem:[#allocation0]]
  $region49: #{tpu_custom_call.1} parent=0
    _
  %s7 = ssub.s32 1, %s5
  %s8 = scalar_select 0, %s7, %s5
  loop: start=0, step=1, limit=4
  $region2: #{tpu_custom_call.1} parent=0 // loop_pre_header
    _
  $region3: #{tpu_custom_call.1} parent=0 // loop_header
    %s10 = sphi 0, %s14
    %p11 = scmp.ge.s32.totalorder %s10, 4
    %s17 = sphi 0, %s36
    %s18 = sphi 0, %s32
    %s19 = sphi 0, %s28
    %s20 = sphi 0, %s17
    %s21 = sphi 0, %s18
    %s22 = sphi 0, %s19
    %s23 = sphi 0, %s20
    %s24 = sphi 0, %s21
    %s25 = sphi 0, %s22
    %s51 = sphi 0, %s53
    %s54 = sphi 0, %s51
    %s55 = sphi 0, %s54
    %s71 = sphi 0, %s55
    %s81 = sphi 0, %s83
    %s84 = sphi 0, %s81
    %s85 = sphi 0, %s84
    %s101 = sphi 0, %s85
    %s107 = sphi 0, %s109
    %s110 = sphi 0, %s107
    %s111 = sphi 0, %s110
    %s127 = sphi 0, %s111
    %s133 = sphi 0, %s135
    %s136 = sphi 0, %s133
    %s137 = sphi 0, %s136
    %s153 = sphi 0, %s137
    %s163 = sphi 0, %s165
    %s166 = sphi 0, %s163
    %s167 = sphi 0, %s166
    %s183 = sphi 0, %s167
  $region4: #{tpu_custom_call.1} parent=0 // loop_header_branch
    %13 = sbr.rel (%p11) target = $region8
  $region5: #{tpu_custom_call.1} parent=0 // loop_body
    %s15 = ssub.s32 %s10, 1
    %s16 = ssub.s32 %s10, 2
    %s26 = sadd.s32 1, %s19
    %p27 = scmp.ge.s32.totalorder %s26, 1
    %s28 = scalar_select %p27, 0, %s26
    %s29 = sadd.s32 1, %s18
    %s30 = scalar_select %p27, %s29, %s18
    %p31 = scmp.ge.s32.totalorder %s30, 1
    %s32 = scalar_select %p31, 0, %s30
    %s33 = sadd.s32 1, %s17
    %s34 = scalar_select %p31, %s33, %s17
    %p35 = scmp.ge.s32.totalorder %s34, 2
    %s36 = scalar_select %p35, 0, %s34
    %s37 = smul.u32 %s19, 2
    %s38 = ssub.s32 %s37, 1
    %p39 = scmp.gt.s32.totalorder %s38, 0
    %s40 = scalar_select %p39, %s38, 0
    %s41 = smul.u32 %s28, 2
    %s42 = ssub.s32 %s41, 1
    %p43 = scmp.gt.s32.totalorder %s42, 0
    %s44 = scalar_select %p43, %s42, 0
    %s45 = ssub.s32 %s17, %s36
    %s46 = ssub.s32 %s40, %s44
    %s47 = sor.u32 %s45, %s46
    %s48 = ssub.s32 %s18, %s32
    %s49 = sor.u32 %s47, %s48
    %p50 = scmp.eq.s32.totalorder %s49, 0
    %s52 = sadd.s32 %s51, 1
    %s53 = scalar_select %p50, %s51, %s52
    %p56 = pneg %p50
    %p57 = scmp.eq.s32.totalorder %s10, 1
    %p58 = por %p56, %p57
    %p59 = scmp.ne.s32.totalorder %s51, %s54
    %p60 = scmp.eq.s32.totalorder %s10, 0
    %p61 = por %p59, %p60
    %p62 = scmp.ne.s32.totalorder %s51, %s54
    %p63 = scmp.eq.s32.totalorder %s15, 1
    %p64 = por %p62, %p63
    %p65 = scmp.ne.s32.totalorder %s54, %s55
    %p66 = scmp.eq.s32.totalorder %s15, 0
    %p67 = por %p65, %p66
    %p68 = scmp.ne.s32.totalorder %s54, %s55
    %p69 = scmp.eq.s32.totalorder %s16, 1
    %p70 = por %p68, %p69
    %p72 = scmp.ne.s32.totalorder %s55, %s71
    %p73 = scmp.eq.s32.totalorder %s16, 0
    %p74 = por %p72, %p73
    %s75 = ssub.s32 %s17, %s36
    %s76 = ssub.s32 %s19, %s28
    %s77 = sor.u32 %s75, %s76
    %s78 = ssub.s32 %s18, %s32
    %s79 = sor.u32 %s77, %s78
    %p80 = scmp.eq.s32.totalorder %s79, 0
    %s82 = sadd.s32 %s81, 1
    %s83 = scalar_select %p80, %s81, %s82
    %p86 = pneg %p80
    %p87 = scmp.eq.s32.totalorder %s10, 1
    %p88 = por %p86, %p87
    %p89 = scmp.ne.s32.totalorder %s81, %s84
    %p90 = scmp.eq.s32.totalorder %s10, 0
    %p91 = por %p89, %p90
    %p92 = scmp.ne.s32.totalorder %s81, %s84
    %p93 = scmp.eq.s32.totalorder %s15, 1
    %p94 = por %p92, %p93
    %p95 = scmp.ne.s32.totalorder %s84, %s85
    %p96 = scmp.eq.s32.totalorder %s15, 0
    %p97 = por %p95, %p96
    %p98 = scmp.ne.s32.totalorder %s84, %s85
    %p99 = scmp.eq.s32.totalorder %s16, 1
    %p100 = por %p98, %p99
    %p102 = scmp.ne.s32.totalorder %s85, %s101
    %p103 = scmp.eq.s32.totalorder %s16, 0
    %p104 = por %p102, %p103
    %s105 = ssub.s32 %s18, %s32
    %p106 = scmp.eq.s32.totalorder %s105, 0
    %s108 = sadd.s32 %s107, 1
    %s109 = scalar_select %p106, %s107, %s108
    %p112 = pneg %p106
    %p113 = scmp.eq.s32.totalorder %s10, 1
    %p114 = por %p112, %p113
    %p115 = scmp.ne.s32.totalorder %s107, %s110
    %p116 = scmp.eq.s32.totalorder %s10, 0
    %p117 = por %p115, %p116
    %p118 = scmp.ne.s32.totalorder %s107, %s110
    %p119 = scmp.eq.s32.totalorder %s15, 1
    %p120 = por %p118, %p119
    %p121 = scmp.ne.s32.totalorder %s110, %s111
    %p122 = scmp.eq.s32.totalorder %s15, 0
    %p123 = por %p121, %p122
    %p124 = scmp.ne.s32.totalorder %s110, %s111
    %p125 = scmp.eq.s32.totalorder %s16, 1
    %p126 = por %p124, %p125
    %p128 = scmp.ne.s32.totalorder %s111, %s127
    %p129 = scmp.eq.s32.totalorder %s16, 0
    %p130 = por %p128, %p129
    %s131 = ssub.s32 %s18, %s32
    %p132 = scmp.eq.s32.totalorder %s131, 0
    %s134 = sadd.s32 %s133, 1
    %s135 = scalar_select %p132, %s133, %s134
    %p138 = pneg %p132
    %p139 = scmp.eq.s32.totalorder %s10, 1
    %p140 = por %p138, %p139
    %p141 = scmp.ne.s32.totalorder %s133, %s136
    %p142 = scmp.eq.s32.totalorder %s10, 0
    %p143 = por %p141, %p142
    %p144 = scmp.ne.s32.totalorder %s133, %s136
    %p145 = scmp.eq.s32.totalorder %s15, 1
    %p146 = por %p144, %p145
    %p147 = scmp.ne.s32.totalorder %s136, %s137
    %p148 = scmp.eq.s32.totalorder %s15, 0
    %p149 = por %p147, %p148
    %p150 = scmp.ne.s32.totalorder %s136, %s137
    %p151 = scmp.eq.s32.totalorder %s16, 1
    %p152 = por %p150, %p151
    %p154 = scmp.ne.s32.totalorder %s137, %s153
    %p155 = scmp.eq.s32.totalorder %s16, 0
    %p156 = por %p154, %p155
    %s157 = ssub.s32 %s17, %s36
    %s158 = ssub.s32 %s19, %s28
    %s159 = sor.u32 %s157, %s158
    %s160 = ssub.s32 %s18, %s32
    %s161 = sor.u32 %s159, %s160
    %p162 = scmp.eq.s32.totalorder %s161, 0
    %s164 = sadd.s32 %s163, 1
    %s165 = scalar_select %p162, %s163, %s164
    %p168 = pneg %p162
    %p169 = scmp.eq.s32.totalorder %s10, 1
    %p170 = por %p168, %p169
    %p171 = scmp.ne.s32.totalorder %s163, %s166
    %p172 = scmp.eq.s32.totalorder %s10, 0
    %p173 = por %p171, %p172
    %p174 = scmp.ne.s32.totalorder %s163, %s166
    %p175 = scmp.eq.s32.totalorder %s15, 1
    %p176 = por %p174, %p175
    %p177 = scmp.ne.s32.totalorder %s166, %s167
    %p178 = scmp.eq.s32.totalorder %s15, 0
    %p179 = por %p177, %p178
    %p180 = scmp.ne.s32.totalorder %s166, %s167
    %p181 = scmp.eq.s32.totalorder %s16, 1
    %p182 = por %p180, %p181
    %p184 = scmp.ne.s32.totalorder %s167, %s183
    %p185 = scmp.eq.s32.totalorder %s16, 0
    %p186 = por %p184, %p185
    %p187 = scmp.le.s32.totalorder 1, %s10
    %p188 = scmp.lt.s32.totalorder %s10, 3
    %p189 = pnand %p187, %p188
    %p190 = pneg %p189
    // Predicated region
    $region9: #{tpu_custom_call.1} parent=5 // pred_check
      _
    $region10: #{tpu_custom_call.1} parent=5 // pred_check_branch
      %192 = sbr.rel (%p189) target = $region12
    $region11: #{tpu_custom_call.1} parent=5 // pred_region
      %s193 = ssub.s32 %s10, 1
      // Predicated region
      $region13: #{tpu_custom_call.1} parent=11 // pred_check
        %p194 = pneg %p123
      $region14: #{tpu_custom_call.1} parent=11 // pred_check_branch
        %196 = sbr.rel (%p194) target = $region16
      $region15: #{tpu_custom_call.1} parent=11 // pred_region
        %p197 = scmp.lt.s32.totalorder %s21, 0
        %s198 = scalar_select %p197, %s21, 0
        %s199 = scalar_lea.vmem %s2, %s198
      $region16: #{tpu_custom_call.1} parent=11 // pred_fallthru
        _
      // Predicated region
      $region17: #{tpu_custom_call.1} parent=11 // pred_check
        %p200 = pneg %p149
      $region18: #{tpu_custom_call.1} parent=11 // pred_check_branch
        %202 = sbr.rel (%p200) target = $region20
      $region19: #{tpu_custom_call.1} parent=11 // pred_region
        %p203 = scmp.lt.s32.totalorder %s21, 0
        %s204 = scalar_select %p203, %s21, 0
        %s205 = scalar_lea.vmem %s3, %s204
      $region20: #{tpu_custom_call.1} parent=11 // pred_fallthru
        _
    $region12: #{tpu_custom_call.1} parent=5 // pred_fallthru
      _
    %p206 = scmp.lt.s32.totalorder %s10, 2
    // Predicated region
    $region21: #{tpu_custom_call.1} parent=5 // pred_check
      %p207 = pneg %p206
    $region22: #{tpu_custom_call.1} parent=5 // pred_check_branch
      %209 = sbr.rel (%p207) target = $region24
    $region23: #{tpu_custom_call.1} parent=5 // pred_region
      // Predicated region
      $region25: #{tpu_custom_call.1} parent=23 // pred_check
        %p210 = pneg %p61
      $region26: #{tpu_custom_call.1} parent=23 // pred_check_branch
        %212 = sbr.rel (%p210) target = $region28
      $region27: #{tpu_custom_call.1} parent=23 // pred_region
        %s213 = smul.u32 %s19, 2
        %s214 = ssub.s32 %s213, 1
        %p215 = scmp.gt.s32.totalorder %s214, 0
        %s216 = scalar_select %p215, %s214, 0
        %p217 = scmp.lt.s32.totalorder %s17, 1
        %s218 = scalar_select %p217, %s17, 1
        %p219 = scmp.lt.s32.totalorder %s216, 1
        %s220 = scalar_select %p219, %s216, 1
        %p221 = scmp.lt.s32.totalorder %s18, 0
        %s222 = scalar_select %p221, %s18, 0
        %s223 = sadd.s32 %s222, %s220
        %s224 = smul.addr %s218, 2
        %s225 = sadd.s32 %s223, %s224
        %s226 = smul.addr %s225, 8
        %s227 = scalar_lea.vmem %s0, %s226
        %s228 = smul.u32 %s19, 2
        %s229 = ssub.s32 %s228, 1
        %p230 = scmp.gt.s32.totalorder %s229, 0
        %s231 = scalar_select %p230, %s229, 0
      $region28: #{tpu_custom_call.1} parent=23 // pred_fallthru
        _
      // Predicated region
      $region29: #{tpu_custom_call.1} parent=23 // pred_check
        %p232 = pneg %p91
      $region30: #{tpu_custom_call.1} parent=23 // pred_check_branch
        %234 = sbr.rel (%p232) target = $region32
      $region31: #{tpu_custom_call.1} parent=23 // pred_region
        %s235 = smul.u32 2, %s19
        %p236 = scmp.lt.s32.totalorder %s17, 1
        %s237 = scalar_select %p236, %s17, 1
        %p238 = scmp.lt.s32.totalorder %s235, 1
        %s239 = scalar_select %p238, %s235, 1
        %p240 = scmp.lt.s32.totalorder %s18, 0
        %s241 = scalar_select %p240, %s18, 0
        %s242 = sadd.s32 %s241, %s239
        %s243 = smul.addr %s237, 2
        %s244 = sadd.s32 %s242, %s243
        %s245 = smul.addr %s244, 8
        %s246 = scalar_lea.vmem %s1, %s245
        %s247 = smul.u32 2, %s19
      $region32: #{tpu_custom_call.1} parent=23 // pred_fallthru
        _
    $region24: #{tpu_custom_call.1} parent=5 // pred_fallthru
      _
    %p248 = scmp.le.s32.totalorder 1, %s10
    %p249 = scmp.lt.s32.totalorder %s10, 3
    %p250 = pnand %p248, %p249
    %p251 = pneg %p250
    // Predicated region
    $region33: #{tpu_custom_call.1} parent=5 // pred_check
      _
    $region34: #{tpu_custom_call.1} parent=5 // pred_check_branch
      %253 = sbr.rel (%p250) target = $region36
    $region35: #{tpu_custom_call.1} parent=5 // pred_region
      %s254 = ssub.s32 %s10, 1
      %s255 = smul.u32 %s22, 2
      %s256 = ssub.s32 %s255, 1
      %p257 = scmp.gt.s32.totalorder %s256, 0
      %s258 = scalar_select %p257, %s256, 0
      %p259 = scmp.lt.s32.totalorder %s20, 1
      %s260 = scalar_select %p259, %s20, 1
      %p261 = scmp.lt.s32.totalorder %s258, 1
      %s262 = scalar_select %p261, %s258, 1
      %p263 = scmp.lt.s32.totalorder %s21, 0
      %s264 = scalar_select %p263, %s21, 0
      %s265 = sadd.s32 %s264, %s262
      %s266 = smul.addr %s260, 2
      %s267 = sadd.s32 %s265, %s266
      %s268 = smul.addr %s267, 8
      %s269 = scalar_lea.vmem %s0, %s268
      %p270 = pneg %p67
      %p271 = pneg %p64
      %s272 = smul.u32 2, %s22
      %p273 = scmp.lt.s32.totalorder %s20, 1
      %s274 = scalar_select %p273, %s20, 1
      %p275 = scmp.lt.s32.totalorder %s272, 1
      %s276 = scalar_select %p275, %s272, 1
      %p277 = scmp.lt.s32.totalorder %s21, 0
      %s278 = scalar_select %p277, %s21, 0
      %s279 = sadd.s32 %s278, %s276
      %s280 = smul.addr %s274, 2
      %s281 = sadd.s32 %s279, %s280
      %s282 = smul.addr %s281, 8
      %s283 = scalar_lea.vmem %s1, %s282
      %p284 = pneg %p97
      %p285 = pneg %p94
      %p286 = scmp.lt.s32.totalorder %s21, 0
      %s287 = scalar_select %p286, %s21, 0
      %s288 = scalar_lea.vmem %s2, %s287
      %p289 = pneg %p123
      %p290 = pneg %p120
      %p291 = scmp.lt.s32.totalorder %s21, 0
      %s292 = scalar_select %p291, %s21, 0
      %s293 = scalar_lea.vmem %s3, %s292
      %p294 = pneg %p149
      %p295 = pneg %p146
      %p296 = pneg %p179
      %p297 = pneg %p176
      %p298 = scmp.lt.s32.totalorder %s20, 1
      %s299 = scalar_select %p298, %s20, 1
      %p300 = scmp.lt.s32.totalorder %s22, 0
      %s301 = scalar_select %p300, %s22, 0
      %p302 = scmp.lt.s32.totalorder %s21, 0
      %s303 = scalar_select %p302, %s21, 0
      %s304 = sadd.s32 %s303, %s301
      %s305 = sadd.s32 %s304, %s299
      %s306 = smul.addr %s305, 8
      %s307 = scalar_lea.vmem %s4, %s306
      %s308 = smul.u32 %s22, 2
      %s309 = ssub.s32 %s308, 1
      %p310 = scmp.gt.s32.totalorder %s309, 0
      %s311 = scalar_select %p310, %s309, 0
      %p312 = scmp.lt.s32.totalorder %s20, 1
      %s313 = scalar_select %p312, %s20, 1
      %p314 = scmp.lt.s32.totalorder %s311, 1
      %s315 = scalar_select %p314, %s311, 1
      %p316 = scmp.lt.s32.totalorder %s21, 0
      %s317 = scalar_select %p316, %s21, 0
      %s318 = sadd.s32 %s317, %s315
      %s319 = smul.addr %s313, 2
      %s320 = sadd.s32 %s318, %s319
      %s321 = smul.addr %s320, 8
      %s322 = scalar_lea.vmem %s0, %s321
      %s323 = smul.u32 %s22, 2
      %s324 = ssub.s32 %s323, 1
      %p325 = scmp.gt.s32.totalorder %s324, 0
      %s326 = scalar_select %p325, %s324, 0
      %s327 = smul.u32 2, %s22
      %p328 = scmp.lt.s32.totalorder %s20, 1
      %s329 = scalar_select %p328, %s20, 1
      %p330 = scmp.lt.s32.totalorder %s327, 1
      %s331 = scalar_select %p330, %s327, 1
      %p332 = scmp.lt.s32.totalorder %s21, 0
      %s333 = scalar_select %p332, %s21, 0
      %s334 = sadd.s32 %s333, %s331
      %s335 = smul.addr %s329, 2
      %s336 = sadd.s32 %s334, %s335
      %s337 = smul.addr %s336, 8
      %s338 = scalar_lea.vmem %s1, %s337
      %s339 = smul.u32 2, %s22
      %p340 = scmp.lt.s32.totalorder %s21, 0
      %s341 = scalar_select %p340, %s21, 0
      %s342 = scalar_lea.vmem %s2, %s341
      %p343 = scmp.lt.s32.totalorder %s21, 0
      %s344 = scalar_select %p343, %s21, 0
      %s345 = scalar_lea.vmem %s3, %s344
      %p346 = scmp.lt.s32.totalorder %s20, 1
      %s347 = scalar_select %p346, %s20, 1
      %p348 = scmp.lt.s32.totalorder %s22, 0
      %s349 = scalar_select %p348, %s22, 0
      %p350 = scmp.lt.s32.totalorder %s21, 0
      %s351 = scalar_select %p350, %s21, 0
      %s352 = sadd.s32 %s351, %s349
      %s353 = sadd.s32 %s352, %s347
      %s354 = smul.addr %s353, 8
      %s355 = scalar_lea.vmem %s4, %s354
      %p356 = scmp.eq.s32.totalorder %s22, 0
      %v357 = vld [vmem:[%s342] sm:$0x1]
      %v358 = vld [vmem:[%s342 + $0x1] sm:$0x1]
      %v359 = vld [vmem:[%s342 + $0x2] sm:$0x1]
      %v360 = vld [vmem:[%s345] sm:$0x1]
      %v361 = vld [vmem:[%s322 + $0x7] sm:$0x1]
      %s362 = scalar_select %p356, 1, 0
      %v363 = vstv %s362
      %vm364 = vcmp.eq.s32.totalorder %v363, 1
      %v365 = vsel %vm364, 0.0, %v361
      %s366 = scalar_lea.vmem %s338, 1
      %v367 = vld [vmem:[%s366] ss:$2 sm:$0x7f]
      %v369 = vrot.slane %v367, 7
      %vm371 = vcmask 1040384
      %v372 = vsel %vm371, %v365, %v369
      %v373 = vld [vmem:[%s338] ss:$2 sm:$0xff]
      %v374 = vld [vmem:[%s366] ss:$2 sm:$0xff]
      %v376 = vlaneseq
      %v377 = vshrl.u32 %v376, 7
      %v378 = vsub.s32 0, %v377
      %v379 = vrot.slane %v357, %v378
      %v381 = vmul.f32 %v372, %v379
      %v383 = vlaneseq
      %v384 = vshrl.u32 %v383, 7
      %v385 = vsub.s32 0, %v384
      %v386 = vrot.slane %v358, %v385
      %v388 = vmul.f32 %v373, %v386
      %v389 = vadd.f32 %v381, %v388
      %v391 = vlaneseq
      %v392 = vshrl.u32 %v391, 7
      %v393 = vsub.s32 0, %v392
      %v394 = vrot.slane %v359, %v393
      %v396 = vmul.f32 %v374, %v394
      %v397 = vadd.f32 %v389, %v396
      %v399 = vlaneseq
      %v400 = vshrl.u32 %v399, 7
      %v401 = vsub.s32 0, %v400
      %v402 = vrot.slane %v360, %v401
      %v404 = vadd.f32 %v397, %v402
      %vm405 = vcmask 31744
      %406 = vst.msk [vmem:[%s355] sm:$0xff] %vm405, %v404
      %p407 = scmp.lt.s32.totalorder %s20, 1
      %s408 = scalar_select %p407, %s20, 1
      %p409 = scmp.lt.s32.totalorder %s22, 0
      %s410 = scalar_select %p409, %s22, 0
      %p411 = scmp.lt.s32.totalorder %s21, 0
      %s412 = scalar_select %p411, %s21, 0
      %s413 = sadd.s32 %s412, %s410
      %s414 = sadd.s32 %s413, %s408
      %s415 = smul.addr %s414, 8
      %s416 = scalar_lea.vmem %s4, %s415
      // Predicated region
      $region37: #{tpu_custom_call.1} parent=35 // pred_check
        %p417 = pneg %p176
      $region38: #{tpu_custom_call.1} parent=35 // pred_check_branch
        %419 = sbr.rel (%p417) target = $region40
      $region39: #{tpu_custom_call.1} parent=35 // pred_region
        _
      $region40: #{tpu_custom_call.1} parent=35 // pred_fallthru
        _
    $region36: #{tpu_custom_call.1} parent=5 // pred_fallthru
      _
    %p420 = scmp.le.s32.totalorder 2, %s10
    // Predicated region
    $region41: #{tpu_custom_call.1} parent=5 // pred_check
      %p421 = pneg %p420
    $region42: #{tpu_custom_call.1} parent=5 // pred_check_branch
      %423 = sbr.rel (%p421) target = $region44
    $region43: #{tpu_custom_call.1} parent=5 // pred_region
      %s424 = ssub.s32 %s10, 2
      // Predicated region
      $region45: #{tpu_custom_call.1} parent=43 // pred_check
        %p425 = pneg %p182
      $region46: #{tpu_custom_call.1} parent=43 // pred_check_branch
        %427 = sbr.rel (%p425) target = $region48
      $region47: #{tpu_custom_call.1} parent=43 // pred_region
        %p428 = scmp.lt.s32.totalorder %s23, 1
        %s429 = scalar_select %p428, %s23, 1
        %p430 = scmp.lt.s32.totalorder %s25, 0
        %s431 = scalar_select %p430, %s25, 0
        %p432 = scmp.lt.s32.totalorder %s24, 0
        %s433 = scalar_select %p432, %s24, 0
        %s434 = sadd.s32 %s433, %s431
        %s435 = sadd.s32 %s434, %s429
        %s436 = smul.addr %s435, 8
        %s437 = scalar_lea.vmem %s4, %s436
      $region48: #{tpu_custom_call.1} parent=43 // pred_fallthru
        _
    $region44: #{tpu_custom_call.1} parent=5 // pred_fallthru
      _
  $region6: #{tpu_custom_call.1} parent=0 // loop_footer
    %s14 = sadd.s32 1, %s10
  $region7: #{tpu_custom_call.1} parent=0 // loop_footer_branch
    %9 = sbr.rel target = $region3
  $region8: #{tpu_custom_call.1} parent=0 // loop_exit
    _

</llo_original>
